<compile_context>
chip_gen: v7x
topology: tpu7x:2x2x1
jax: 0.10.0
libtpu: 0.0.40
codegen_flags: <defaults>
</compile_context>

<pallas_src>
import functools

import jax
import jax.numpy as jnp
from jax import lax
from jax.experimental import pallas as pl
from jax.experimental.pallas import tpu as pltpu

IN_DIM, H1_DIM, H2_DIM, OUT_DIM = 4, 10, 6, 3
OUT_PAD = 8  # pad layer-3 rows to a full sublane group -> aligned in-kernel transpose


def _round_up(n, m):
    return ((n + m - 1) // m) * m


def mlp_kernel(x_ref, w1_ref, b1_ref, w2_ref, b2_ref, w3_ref, b3_ref, o_ref):
    # x_ref: (block_b, IN_DIM) -- raw PyTorch layout, no wrapper transpose.
    x = x_ref[...]

    # Layer 1: contract x's feature (last) dim in-kernel:
    #   (10, 4) x (block_b, 4)^T -> (10, block_b); batch lands on the 128-lane axis.
    h1 = lax.dot_general(
        w1_ref[...], x, (((1,), (1,)), ((), ())),
        preferred_element_type=jnp.float32,
    )
    h1 = jnp.maximum(h1 + b1_ref[...], 0.0)                       # (10, block_b)

    # Layer 2: (6, 10) @ (10, block_b) -> ReLU
    h2 = jnp.dot(w2_ref[...], h1, preferred_element_type=jnp.float32)
    h2 = jnp.maximum(h2 + b2_ref[...], 0.0)                       # (6, block_b)

    # Layer 3 (rows zero-padded 3 -> 8): (8, 6) @ (6, block_b) -> (8, block_b)
    out_t = jnp.dot(w3_ref[...], h2, preferred_element_type=jnp.float32)
    out_t = out_t + b3_ref[...]                                   # (8, block_b)

    # In-kernel transpose (XLU, (8,128)-aligned shapes) so the HBM store is a
    # direct (block_b, OUT_DIM) block -- no wrapper-side output transpose.
    out = out_t.T                                                 # (block_b, 8)
    o_ref[...] = out[:, :OUT_DIM]                                 # (block_b, 3)


@functools.partial(jax.jit, static_argnames=("block_b",))
def classifier_forward(x, params, *, block_b=4096):
    """x: (B, 4) float32 (PyTorch convention). Returns (B, 3)."""
    w1, b1, w2, b2, w3, b3 = params          # W: (out, in), b: (out,)
    B = x.shape[0]

    # Clamp padding for small batches: never pad past the 128-lane granule.
    Bp128 = _round_up(B, 128)
    bb = max(128, min(block_b, Bp128))
    # v7x megacore: keep >= 8 grid steps for large batches so both TensorCores get
    # work, but never shrink a tile below 2048 (per-step overhead on v5e/v6e).
    if Bp128 >= 8 * 2048:
        bb = min(bb, max(2048, _round_up(pl.cdiv(Bp128, 8), 128)))
    Bp = _round_up(Bp128, bb)

    x = x.astype(jnp.float32)
    if Bp != B:
        x = jnp.pad(x, ((0, Bp - B), (0, 0)))

    # Biases as (out, 1) columns -> broadcast along the lane/batch axis in-kernel.
    b1c = b1.reshape(H1_DIM, 1).astype(jnp.float32)
    b2c = b2.reshape(H2_DIM, 1).astype(jnp.float32)
    # Layer-3 weights/bias zero-padded to 8 rows so every in-kernel shape is
    # sublane-aligned; padded rows are dropped before the store.
    w3p = jnp.zeros((OUT_PAD, H2_DIM), jnp.float32).at[:OUT_DIM].set(
        w3.astype(jnp.float32))
    b3p = jnp.zeros((OUT_PAD, 1), jnp.float32).at[:OUT_DIM, 0].set(
        b3.astype(jnp.float32))

    grid = (Bp // bb,)
    resident = lambda i: (0, 0)              # weights/biases: same block every step

    flops_per_sample = 2 * (IN_DIM * H1_DIM + H1_DIM * H2_DIM + H2_DIM * OUT_DIM)
    weight_bytes = 4 * (H1_DIM * IN_DIM + H1_DIM + H2_DIM * H1_DIM + H2_DIM
                        + OUT_PAD * H2_DIM + OUT_PAD)

    out = pl.pallas_call(
        mlp_kernel,
        out_shape=jax.ShapeDtypeStruct((Bp, OUT_DIM), jnp.float32),
        grid=grid,
        in_specs=[
            pl.BlockSpec((bb, IN_DIM), lambda i: (i, 0)),          # x tile (pipelined)
            pl.BlockSpec((H1_DIM, IN_DIM), resident),              # w1
            pl.BlockSpec((H1_DIM, 1), resident),                   # b1
            pl.BlockSpec((H2_DIM, H1_DIM), resident),              # w2
            pl.BlockSpec((H2_DIM, 1), resident),                   # b2
            pl.BlockSpec((OUT_PAD, H2_DIM), resident),             # w3 (row-padded)
            pl.BlockSpec((OUT_PAD, 1), resident),                  # b3 (row-padded)
        ],
        out_specs=pl.BlockSpec((bb, OUT_DIM), lambda i: (i, 0)),
        compiler_params=pltpu.CompilerParams(
            dimension_semantics=("parallel",),                     # megacore on v7x
            vmem_limit_bytes=32 * 1024 * 1024,                     # v5e default is 16 MiB
        ),
        cost_estimate=pl.CostEstimate(
            flops=flops_per_sample * Bp,
            transcendentals=0,
            bytes_accessed=4 * (IN_DIM + OUT_DIM) * Bp + weight_bytes,
        ),
    )(x, w1.astype(jnp.float32), b1c, w2.astype(jnp.float32), b2c, w3p, b3p)

    # Only drop batch padding -- no transpose on the output path.
    return out[:B]


def init_params(key):
    """PyTorch nn.Linear init: W (out,in), b (out,), U(-1/sqrt(fan_in), 1/sqrt(fan_in))."""
    def linear(key, fan_in, fan_out):
        kw, kb = jax.random.split(key)
        bound = 1.0 / (fan_in ** 0.5)
        w = jax.random.uniform(kw, (fan_out, fan_in), jnp.float32, -bound, bound)
        b = jax.random.uniform(kb, (fan_out,), jnp.float32, -bound, bound)
        return w, b

    k1, k2, k3 = jax.random.split(key, 3)
    w1, b1 = linear(k1, IN_DIM, H1_DIM)
    w2, b2 = linear(k2, H1_DIM, H2_DIM)
    w3, b3 = linear(k3, H2_DIM, OUT_DIM)
    return (w1, b1, w2, b2, w3, b3)


def reference_forward(x, params):
    w1, b1, w2, b2, w3, b3 = params
    hp = lax.Precision.HIGHEST   # f32-accurate baseline (TPU default dot is low-prec)
    h = jnp.maximum(jnp.dot(x, w1.T, precision=hp) + b1, 0.0)
    h = jnp.maximum(jnp.dot(h, w2.T, precision=hp) + b2, 0.0)
    return jnp.dot(h, w3.T, precision=hp) + b3


if __name__ == "__main__":
    key = jax.random.PRNGKey(0)
    kx, kx2, kp = jax.random.split(key, 3)
    params = init_params(kp)

    # Small batch consistent with the module's (B, 4) input.
    B = 8
    x = jax.random.normal(kx, (B, IN_DIM), dtype=jnp.float32)
    out = jax.block_until_ready(classifier_forward(x, params))
    ref = reference_forward(x, params)
    assert out.shape == (B, OUT_DIM), out.shape
    assert jnp.allclose(out, ref, atol=1e-4, rtol=1e-4), "mismatch vs reference (B=8)"

    # Second check exercising the multi-tile grid + batch padding path.
    B2 = 300
    x2 = jax.random.normal(kx2, (B2, IN_DIM), dtype=jnp.float32)
    out2 = jax.block_until_ready(classifier_forward(x2, params, block_b=128))
    ref2 = reference_forward(x2, params)
    assert out2.shape == (B2, OUT_DIM), out2.shape
    assert jnp.allclose(out2, ref2, atol=1e-4, rtol=1e-4), "mismatch vs reference (B=300)"

    print("KERNEL_OK")
</pallas_src>

<mosaic_0001>
module attributes {stable_mosaic.version = 11 : i64} {
  func.func @mlp_kernel(%arg0: i32, %arg1: memref<128x4xf32, #tpu.memory_space<vmem>>, %arg2: memref<10x4xf32, #tpu.memory_space<vmem>>, %arg3: memref<10x1xf32, #tpu.memory_space<vmem>>, %arg4: memref<6x10xf32, #tpu.memory_space<vmem>>, %arg5: memref<6x1xf32, #tpu.memory_space<vmem>>, %arg6: memref<8x6xf32, #tpu.memory_space<vmem>>, %arg7: memref<8x1xf32, #tpu.memory_space<vmem>>, %arg8: memref<128x3xf32, #tpu.memory_space<vmem>>) attributes {dimension_semantics = [#tpu.dimension_semantics<parallel>], iteration_bounds = array<i64: 1>, scalar_prefetch = 0 : i64, scratch_operands = 0 : i64, tpu.core_type = #tpu.core_type<tc>, window_params = [{transform_indices = @transform_0, window_bounds = array<i64: 128, 4>}, {pipeline_mode = #tpu.pipeline_mode<synchronous>, transform_indices = @transform_1, window_bounds = array<i64: 10, 4>}, {pipeline_mode = #tpu.pipeline_mode<synchronous>, transform_indices = @transform_2, window_bounds = array<i64: 10, 1>}, {pipeline_mode = #tpu.pipeline_mode<synchronous>, transform_indices = @transform_3, window_bounds = array<i64: 6, 10>}, {pipeline_mode = #tpu.pipeline_mode<synchronous>, transform_indices = @transform_4, window_bounds = array<i64: 6, 1>}, {pipeline_mode = #tpu.pipeline_mode<synchronous>, transform_indices = @transform_5, window_bounds = array<i64: 8, 6>}, {pipeline_mode = #tpu.pipeline_mode<synchronous>, transform_indices = @transform_6, window_bounds = array<i64: 8, 1>}, {transform_indices = @transform_7, window_bounds = array<i64: 128, 3>}]} {
    %c0 = arith.constant 0 : index
    %c0_0 = arith.constant 0 : index
    %0 = vector.load %arg1[%c0, %c0_0] : memref<128x4xf32, #tpu.memory_space<vmem>>, vector<128x4xf32>
    %c0_1 = arith.constant 0 : index
    %c0_2 = arith.constant 0 : index
    %1 = vector.load %arg2[%c0_1, %c0_2] : memref<10x4xf32, #tpu.memory_space<vmem>>, vector<10x4xf32>
    %cst = arith.constant dense<0.000000e+00> : vector<10x128xf32>
    %2 = tpu.matmul %1, %0, %cst {dimension_numbers = #tpu.dot_dimension_numbers<[1], [1], [0], [0], [0, 0, 1, 0], [], []>} : vector<10x4xf32>, vector<128x4xf32>, vector<10x128xf32> -> vector<10x128xf32>
    %c0_3 = arith.constant 0 : index
    %c0_4 = arith.constant 0 : index
    %3 = vector.load %arg3[%c0_3, %c0_4] : memref<10x1xf32, #tpu.memory_space<vmem>>, vector<10x1xf32>
    %4 = vector.broadcast %3 : vector<10x1xf32> to vector<10x128xf32>
    %5 = arith.addf %2, %4 : vector<10x128xf32>
    %cst_5 = arith.constant 0.000000e+00 : f32
    %6 = vector.broadcast %cst_5 : f32 to vector<10x128xf32>
    %7 = arith.maximumf %5, %6 : vector<10x128xf32>
    %c0_6 = arith.constant 0 : index
    %c0_7 = arith.constant 0 : index
    %8 = vector.load %arg4[%c0_6, %c0_7] : memref<6x10xf32, #tpu.memory_space<vmem>>, vector<6x10xf32>
    %cst_8 = arith.constant dense<0.000000e+00> : vector<6x128xf32>
    %9 = tpu.matmul %8, %7, %cst_8 {dimension_numbers = #tpu.dot_dimension_numbers<[1], [0], [0], [1], [0, 0, 1, 1], [], []>} : vector<6x10xf32>, vector<10x128xf32>, vector<6x128xf32> -> vector<6x128xf32>
    %c0_9 = arith.constant 0 : index
    %c0_10 = arith.constant 0 : index
    %10 = vector.load %arg5[%c0_9, %c0_10] : memref<6x1xf32, #tpu.memory_space<vmem>>, vector<6x1xf32>
    %11 = vector.broadcast %10 : vector<6x1xf32> to vector<6x128xf32>
    %12 = arith.addf %9, %11 : vector<6x128xf32>
    %cst_11 = arith.constant 0.000000e+00 : f32
    %13 = vector.broadcast %cst_11 : f32 to vector<6x128xf32>
    %14 = arith.maximumf %12, %13 : vector<6x128xf32>
    %c0_12 = arith.constant 0 : index
    %c0_13 = arith.constant 0 : index
    %15 = vector.load %arg6[%c0_12, %c0_13] : memref<8x6xf32, #tpu.memory_space<vmem>>, vector<8x6xf32>
    %cst_14 = arith.constant dense<0.000000e+00> : vector<8x128xf32>
    %16 = tpu.matmul %15, %14, %cst_14 {dimension_numbers = #tpu.dot_dimension_numbers<[1], [0], [0], [1], [0, 0, 1, 1], [], []>} : vector<8x6xf32>, vector<6x128xf32>, vector<8x128xf32> -> vector<8x128xf32>
    %c0_15 = arith.constant 0 : index
    %c0_16 = arith.constant 0 : index
    %17 = vector.load %arg7[%c0_15, %c0_16] : memref<8x1xf32, #tpu.memory_space<vmem>>, vector<8x1xf32>
    %18 = vector.broadcast %17 : vector<8x1xf32> to vector<8x128xf32>
    %19 = arith.addf %16, %18 : vector<8x128xf32>
    %20 = tpu.transpose %19, [1, 0] : vector<8x128xf32> -> vector<128x8xf32>
    %21 = vector.extract_strided_slice %20 {offsets = [0, 0], sizes = [128, 3], strides = [1, 1]} : vector<128x8xf32> to vector<128x3xf32>
    %c0_17 = arith.constant 0 : index
    %c0_18 = arith.constant 0 : index
    %22 = vector.load %arg8[%c0_17, %c0_18] : memref<128x3xf32, #tpu.memory_space<vmem>>, vector<128x3xf32>
    tpu.vector_store %arg8[%c0_17, %c0_18], %21 {strides = array<i32>} : memref<128x3xf32, #tpu.memory_space<vmem>>, vector<128x3xf32>,
    return
  }
  func.func @transform_0(%arg0: i32) -> (i32, i32) {
    %c0_i32 = arith.constant 0 : i32
    %c0_i32_0 = arith.constant 0 : i32
    return %arg0, %c0_i32 : i32, i32
  }
  func.func @transform_1(%arg0: i32) -> (i32, i32) {
    %c0_i32 = arith.constant 0 : i32
    %c0_i32_0 = arith.constant 0 : i32
    %c0_i32_1 = arith.constant 0 : i32
    return %c0_i32, %c0_i32_0 : i32, i32
  }
  func.func @transform_2(%arg0: i32) -> (i32, i32) {
    %c0_i32 = arith.constant 0 : i32
    %c0_i32_0 = arith.constant 0 : i32
    %c0_i32_1 = arith.constant 0 : i32
    return %c0_i32, %c0_i32_0 : i32, i32
  }
  func.func @transform_3(%arg0: i32) -> (i32, i32) {
    %c0_i32 = arith.constant 0 : i32
    %c0_i32_0 = arith.constant 0 : i32
    %c0_i32_1 = arith.constant 0 : i32
    return %c0_i32, %c0_i32_0 : i32, i32
  }
  func.func @transform_4(%arg0: i32) -> (i32, i32) {
    %c0_i32 = arith.constant 0 : i32
    %c0_i32_0 = arith.constant 0 : i32
    %c0_i32_1 = arith.constant 0 : i32
    return %c0_i32, %c0_i32_0 : i32, i32
  }
  func.func @transform_5(%arg0: i32) -> (i32, i32) {
    %c0_i32 = arith.constant 0 : i32
    %c0_i32_0 = arith.constant 0 : i32
    %c0_i32_1 = arith.constant 0 : i32
    return %c0_i32, %c0_i32_0 : i32, i32
  }
  func.func @transform_6(%arg0: i32) -> (i32, i32) {
    %c0_i32 = arith.constant 0 : i32
    %c0_i32_0 = arith.constant 0 : i32
    %c0_i32_1 = arith.constant 0 : i32
    return %c0_i32, %c0_i32_0 : i32, i32
  }
  func.func @transform_7(%arg0: i32) -> (i32, i32) {
    %c0_i32 = arith.constant 0 : i32
    %c0_i32_0 = arith.constant 0 : i32
    return %arg0, %c0_i32 : i32, i32
  }
}

</mosaic_0001>

<llo_original>
// kernel: classifier_forward.1
$region0: #{classifier_forward.1}
  #allocation0 [shape = 'u32[]', space=smem, size = 0x4, offset = 0x4, fixed_abs, tag = 'smem constant byte address 0x4 - core index']
  #allocation1 [shape = 'u32[144,128]{1,0:T(1,128)}', space=vmem, size = 0x12000, scoped, tag = 'internal scratch']
  %s0 = inlined_call_operand.vmem [shape: f32[128,4], index: 0, kind: input, shape index: {}]
  %s1 = inlined_call_operand.vmem [shape: f32[10,4], index: 1, kind: input, shape index: {}]
  %s2 = inlined_call_operand.vmem [shape: f32[10,1], index: 2, kind: input, shape index: {}]
  %s3 = inlined_call_operand.vmem [shape: f32[6,10], index: 3, kind: input, shape index: {}]
  %s4 = inlined_call_operand.vmem [shape: f32[6,1], index: 4, kind: input, shape index: {}]
  %s5 = inlined_call_operand.vmem [shape: f32[8,6], index: 5, kind: input, shape index: {}]
  %s6 = inlined_call_operand.vmem [shape: f32[8,1], index: 6, kind: input, shape index: {}]
  %s7 = inlined_call_operand.vmem [shape: f32[128,3], index: 7, kind: output, shape index: {}]
  %s8 = sld [smem:[#allocation0]]
  $region38: #{classifier_forward.1} parent=0
    _
  %s10 = ssub.s32 1, %s8
  %s11 = scalar_select 0, %s10, %s8
  // Predicated region
  $region2: #{classifier_forward.1} parent=0 // pred_check
    _
  $region3: #{classifier_forward.1} parent=0 // pred_check_branch
    %13 = sbr.rel (0) target = $region5
  $region4: #{classifier_forward.1} parent=0 // pred_region
    _
  $region5: #{classifier_forward.1} parent=0 // pred_fallthru
    _
  // Predicated region
  $region6: #{classifier_forward.1} parent=0 // pred_check
    _
  $region7: #{classifier_forward.1} parent=0 // pred_check_branch
    %15 = sbr.rel (0) target = $region9
  $region8: #{classifier_forward.1} parent=0 // pred_region
    _
  $region9: #{classifier_forward.1} parent=0 // pred_fallthru
    _
  // Predicated region
  $region10: #{classifier_forward.1} parent=0 // pred_check
    _
  $region11: #{classifier_forward.1} parent=0 // pred_check_branch
    %17 = sbr.rel (0) target = $region13
  $region12: #{classifier_forward.1} parent=0 // pred_region
    _
  $region13: #{classifier_forward.1} parent=0 // pred_fallthru
    _
  // Predicated region
  $region14: #{classifier_forward.1} parent=0 // pred_check
    _
  $region15: #{classifier_forward.1} parent=0 // pred_check_branch
    %19 = sbr.rel (0) target = $region17
  $region16: #{classifier_forward.1} parent=0 // pred_region
    _
  $region17: #{classifier_forward.1} parent=0 // pred_fallthru
    _
  // Predicated region
  $region18: #{classifier_forward.1} parent=0 // pred_check
    _
  $region19: #{classifier_forward.1} parent=0 // pred_check_branch
    %21 = sbr.rel (0) target = $region21
  $region20: #{classifier_forward.1} parent=0 // pred_region
    _
  $region21: #{classifier_forward.1} parent=0 // pred_fallthru
    _
  // Predicated region
  $region22: #{classifier_forward.1} parent=0 // pred_check
    _
  $region23: #{classifier_forward.1} parent=0 // pred_check_branch
    %23 = sbr.rel (0) target = $region25
  $region24: #{classifier_forward.1} parent=0 // pred_region
    _
  $region25: #{classifier_forward.1} parent=0 // pred_fallthru
    _
  // Predicated region
  $region26: #{classifier_forward.1} parent=0 // pred_check
    _
  $region27: #{classifier_forward.1} parent=0 // pred_check_branch
    %25 = sbr.rel (0) target = $region29
  $region28: #{classifier_forward.1} parent=0 // pred_region
    _
  $region29: #{classifier_forward.1} parent=0 // pred_fallthru
    _
  %v26 = vld [vmem:[%s0] sm:$0xff]
  %v27 = vld [vmem:[%s0 + $0x8] sm:$0xff]
  %v28 = vld [vmem:[%s0 + $0x10] sm:$0xff]
  %v29 = vld [vmem:[%s0 + $0x18] sm:$0xff]
  %v30 = vld [vmem:[%s0 + $0x20] sm:$0xff]
  %v31 = vld [vmem:[%s0 + $0x28] sm:$0xff]
  %v32 = vld [vmem:[%s0 + $0x30] sm:$0xff]
  %v33 = vld [vmem:[%s0 + $0x38] sm:$0xff]
  %v34 = vld [vmem:[%s0 + $0x40] sm:$0xff]
  %v35 = vld [vmem:[%s0 + $0x48] sm:$0xff]
  %v36 = vld [vmem:[%s0 + $0x50] sm:$0xff]
  %v37 = vld [vmem:[%s0 + $0x58] sm:$0xff]
  %v38 = vld [vmem:[%s0 + $0x60] sm:$0xff]
  %v39 = vld [vmem:[%s0 + $0x68] sm:$0xff]
  %v40 = vld [vmem:[%s0 + $0x70] sm:$0xff]
  %v41 = vld [vmem:[%s0 + $0x78] sm:$0xff]
  %v42 = vld [vmem:[%s1] sm:$0xff]
  %v43 = vld [vmem:[%s1 + $0x8] sm:$0x3]
  %v44 = vld [vmem:[%s2] sm:$0xff]
  %v45 = vld [vmem:[%s2 + $0x8] sm:$0x3]
  %47 = vset.pattern.permute.xlu0 0
  %48 = vperm.xlu0 %47, %v44
  %v49 = vpop.permute.xlu0 %48
  %52 = vset.pattern.permute.xlu0 0
  %53 = vperm.xlu0 %52, %v45
  %v54 = vpop.permute.xlu0 %53
  %vm56 = vcmask 31744
  %v58 = vsel %vm56, %v42, 0
  %v61 = vsel %vm56, %v43, 0
  %v64 = vsel %vm56, %v26, 0
  %v67 = vsel %vm56, %v27, 0
  %v70 = vsel %vm56, %v28, 0
  %v73 = vsel %vm56, %v29, 0
  %v76 = vsel %vm56, %v30, 0
  %v79 = vsel %vm56, %v31, 0
  %v82 = vsel %vm56, %v32, 0
  %v85 = vsel %vm56, %v33, 0
  %v88 = vsel %vm56, %v34, 0
  %v91 = vsel %vm56, %v35, 0
  %v94 = vsel %vm56, %v36, 0
  %v97 = vsel %vm56, %v37, 0
  %v100 = vsel %vm56, %v38, 0
  %v103 = vsel %vm56, %v39, 0
  %v106 = vsel %vm56, %v40, 0
  %v109 = vsel %vm56, %v41, 0
  %111 = vmatprep.subr.mxu0 0.0
  %112 = vmatpush1.xpose.msra.mxu0 %v64
  %113 = vmatprep.subr.mxu0 0.0
  %114 = vmatpush1.xpose.msra.mxu0 %v67
  %115 = vmatprep.subr.mxu0 0.0
  %116 = vmatpush1.xpose.msra.mxu0 %v70
  %117 = vmatprep.subr.mxu0 0.0
  %118 = vmatpush1.xpose.msra.mxu0 %v73
  %119 = vmatprep.subr.mxu0 0.0
  %120 = vmatpush1.xpose.msra.mxu0 %v76
  %121 = vmatprep.subr.mxu0 0.0
  %122 = vmatpush1.xpose.msra.mxu0 %v79
  %123 = vmatprep.subr.mxu0 0.0
  %124 = vmatpush1.xpose.msra.mxu0 %v82
  %125 = vmatprep.subr.mxu0 0.0
  %126 = vmatpush1.xpose.msra.mxu0 %v85
  %127 = vmatprep.subr.mxu0 0.0
  %128 = vmatpush1.xpose.msra.mxu0 %v88
  %129 = vmatprep.subr.mxu0 0.0
  %130 = vmatpush1.xpose.msra.mxu0 %v91
  %131 = vmatprep.subr.mxu0 0.0
  %132 = vmatpush1.xpose.msra.mxu0 %v94
  %133 = vmatprep.subr.mxu0 0.0
  %134 = vmatpush1.xpose.msra.mxu0 %v97
  %135 = vmatprep.subr.mxu0 0.0
  %136 = vmatpush1.xpose.msra.mxu0 %v100
  %137 = vmatprep.subr.mxu0 0.0
  %138 = vmatpush1.xpose.msra.mxu0 %v103
  %139 = vmatprep.subr.mxu0 0.0
  %140 = vmatpush1.xpose.msra.mxu0 %v106
  %141 = vmatprep.subr.mxu0 0.0
  %142 = vmatpush1.xpose.msra.mxu0 %v109
  %143 = vmatprep.subr.mxu0 0.0
  %144 = vmatpush1.xpose.msra.mxu0 0.0
  %145 = vmatprep.subr.mxu0 0.0
  %146 = vmatpush1.xpose.msra.mxu0 0.0
  %147 = vmatprep.subr.mxu0 0.0
  %148 = vmatpush1.xpose.msra.mxu0 0.0
  %149 = vmatprep.subr.mxu0 0.0
  %150 = vmatpush1.xpose.msra.mxu0 0.0
  %151 = vmatprep.subr.mxu0 0.0
  %152 = vmatpush1.xpose.msra.mxu0 0.0
  %153 = vmatprep.subr.mxu0 0.0
  %154 = vmatpush1.xpose.msra.mxu0 0.0
  %155 = vmatprep.subr.mxu0 0.0
  %156 = vmatpush1.xpose.msra.mxu0 0.0
  %157 = vmatprep.subr.mxu0 0.0
  %158 = vmatpush1.xpose.msra.mxu0 0.0
  %159 = vmatprep.subr.mxu0 0.0
  %160 = vmatpush1.xpose.msra.mxu0 0.0
  %161 = vmatprep.subr.mxu0 0.0
  %162 = vmatpush1.xpose.msra.mxu0 0.0
  %163 = vmatprep.subr.mxu0 0.0
  %164 = vmatpush1.xpose.msra.mxu0 0.0
  %165 = vmatprep.subr.mxu0 0.0
  %166 = vmatpush1.xpose.msra.mxu0 0.0
  %167 = vmatprep.subr.mxu0 0.0
  %168 = vmatpush1.xpose.msra.mxu0 0.0
  %169 = vmatprep.subr.mxu0 0.0
  %170 = vmatpush1.xpose.msra.mxu0 0.0
  %171 = vmatprep.subr.mxu0 0.0
  %172 = vmatpush1.xpose.msra.mxu0 0.0
  %173 = vmatprep.subr.mxu0 0.0
  %174 = vmatpush1.xpose.msra.mxu0 0.0
  %175 = vmatprep.mubr.f32.mxu0 0.0
  %176 = vmatmul.mubr.f32.gmra.mrb[0].mxu0 %v58
  %v177 = vpop.f32.mrb[0].mxu0
  %v178 = vadd.f32 %v49, %v177
  %v179 = vpop.f32.mrb[0].mxu0
  %180 = vmatprep.mubr.f32.mxu0 0.0
  %181 = vmatmul.mubr.f32.gmra.mrb[0].mxu0 %v61
  %v182 = vpop.f32.mrb[0].mxu0
  %v183 = vadd.f32 %v54, %v182
  %v184 = vpop.f32.mrb[0].mxu0
  %185 = vdwg.mxu0
  %v186 = vmax.f32 %v178, 0.0
  %v187 = vmax.f32 %v183, 0.0
  %v188 = vld [vmem:[%s3] sm:$0x3f]
  %v189 = vld [vmem:[%s4] sm:$0x3f]
  %191 = vset.pattern.permute.xlu0 0
  %192 = vperm.xlu0 %191, %v189
  %v193 = vpop.permute.xlu0 %192
  %vm195 = vcmask 80896
  %v197 = vsel %vm195, %v188, 0
  %vm199 = vcmask 1041408
  %v201 = vsel %vm199, %v187, 0
  %203 = vmatprep.subr.mxu0 0.0
  %204 = vmatpush1.msra.mxu0 %v186
  %205 = vmatprep.subr.mxu0 0.0
  %206 = vmatpush1.msra.mxu0 %v201
  %207 = vmatprep.subr.mxu0 0.0
  %208 = vmatpush1.msra.mxu0 0.0
  %209 = vmatprep.subr.mxu0 0.0
  %210 = vmatpush1.msra.mxu0 0.0
  %211 = vmatprep.subr.mxu0 0.0
  %212 = vmatpush1.msra.mxu0 0.0
  %213 = vmatprep.subr.mxu0 0.0
  %214 = vmatpush1.msra.mxu0 0.0
  %215 = vmatprep.subr.mxu0 0.0
  %216 = vmatpush1.msra.mxu0 0.0
  %217 = vmatprep.subr.mxu0 0.0
  %218 = vmatpush1.msra.mxu0 0.0
  %219 = vmatprep.subr.mxu0 0.0
  %220 = vmatpush1.msra.mxu0 0.0
  %221 = vmatprep.subr.mxu0 0.0
  %222 = vmatpush1.msra.mxu0 0.0
  %223 = vmatprep.subr.mxu0 0.0
  %224 = vmatpush1.msra.mxu0 0.0
  %225 = vmatprep.subr.mxu0 0.0
  %226 = vmatpush1.msra.mxu0 0.0
  %227 = vmatprep.subr.mxu0 0.0
  %228 = vmatpush1.msra.mxu0 0.0
  %229 = vmatprep.subr.mxu0 0.0
  %230 = vmatpush1.msra.mxu0 0.0
  %231 = vmatprep.subr.mxu0 0.0
  %232 = vmatpush1.msra.mxu0 0.0
  %233 = vmatprep.subr.mxu0 0.0
  %234 = vmatpush1.msra.mxu0 0.0
  %235 = vmatprep.subr.mxu0 0.0
  %236 = vmatpush1.msra.mxu0 0.0
  %237 = vmatprep.subr.mxu0 0.0
  %238 = vmatpush1.msra.mxu0 0.0
  %239 = vmatprep.subr.mxu0 0.0
  %240 = vmatpush1.msra.mxu0 0.0
  %241 = vmatprep.subr.mxu0 0.0
  %242 = vmatpush1.msra.mxu0 0.0
  %243 = vmatprep.subr.mxu0 0.0
  %244 = vmatpush1.msra.mxu0 0.0
  %245 = vmatprep.subr.mxu0 0.0
  %246 = vmatpush1.msra.mxu0 0.0
  %247 = vmatprep.subr.mxu0 0.0
  %248 = vmatpush1.msra.mxu0 0.0
  %249 = vmatprep.subr.mxu0 0.0
  %250 = vmatpush1.msra.mxu0 0.0
  %251 = vmatprep.subr.mxu0 0.0
  %252 = vmatpush1.msra.mxu0 0.0
  %253 = vmatprep.subr.mxu0 0.0
  %254 = vmatpush1.msra.mxu0 0.0
  %255 = vmatprep.subr.mxu0 0.0
  %256 = vmatpush1.msra.mxu0 0.0
  %257 = vmatprep.subr.mxu0 0.0
  %258 = vmatpush1.msra.mxu0 0.0
  %259 = vmatprep.subr.mxu0 0.0
  %260 = vmatpush1.msra.mxu0 0.0
  %261 = vmatprep.subr.mxu0 0.0
  %262 = vmatpush1.msra.mxu0 0.0
  %263 = vmatprep.subr.mxu0 0.0
  %264 = vmatpush1.msra.mxu0 0.0
  %265 = vmatprep.subr.mxu0 0.0
  %266 = vmatpush1.msra.mxu0 0.0
  %267 = vmatprep.mubr.f32.mxu0 0.0
  %268 = vmatmul.mubr.f32.gmra.mrb[0].mxu0 %v197
  %v269 = vpop.f32.mrb[0].mxu0
  %v270 = vadd.f32 %v193, %v269
  %v271 = vpop.f32.mrb[0].mxu0
  %272 = vdwg.mxu0
  %v273 = vmax.f32 %v270, 0.0
  %v274 = vld [vmem:[%s5] sm:$0xff]
  %v275 = vld [vmem:[%s6] sm:$0xff]
  %277 = vset.pattern.permute.xlu0 0
  %278 = vperm.xlu0 %277, %v275
  %v279 = vpop.permute.xlu0 %278
  %vm281 = vcmask 48128
  %v283 = vsel %vm281, %v274, 0
  %vm285 = vcmask 1045504
  %v287 = vsel %vm285, %v273, 0
  %289 = vmatprep.subr.mxu0 0.0
  %290 = vmatpush1.msra.mxu0 %v287
  %291 = vmatprep.subr.mxu0 0.0
  %292 = vmatpush1.msra.mxu0 0.0
  %293 = vmatprep.subr.mxu0 0.0
  %294 = vmatpush1.msra.mxu0 0.0
  %295 = vmatprep.subr.mxu0 0.0
  %296 = vmatpush1.msra.mxu0 0.0
  %297 = vmatprep.subr.mxu0 0.0
  %298 = vmatpush1.msra.mxu0 0.0
  %299 = vmatprep.subr.mxu0 0.0
  %300 = vmatpush1.msra.mxu0 0.0
  %301 = vmatprep.subr.mxu0 0.0
  %302 = vmatpush1.msra.mxu0 0.0
  %303 = vmatprep.subr.mxu0 0.0
  %304 = vmatpush1.msra.mxu0 0.0
  %305 = vmatprep.subr.mxu0 0.0
  %306 = vmatpush1.msra.mxu0 0.0
  %307 = vmatprep.subr.mxu0 0.0
  %308 = vmatpush1.msra.mxu0 0.0
  %309 = vmatprep.subr.mxu0 0.0
  %310 = vmatpush1.msra.mxu0 0.0
  %311 = vmatprep.subr.mxu0 0.0
  %312 = vmatpush1.msra.mxu0 0.0
  %313 = vmatprep.subr.mxu0 0.0
  %314 = vmatpush1.msra.mxu0 0.0
  %315 = vmatprep.subr.mxu0 0.0
  %316 = vmatpush1.msra.mxu0 0.0
  %317 = vmatprep.subr.mxu0 0.0
  %318 = vmatpush1.msra.mxu0 0.0
  %319 = vmatprep.subr.mxu0 0.0
  %320 = vmatpush1.msra.mxu0 0.0
  %321 = vmatprep.subr.mxu0 0.0
  %322 = vmatpush1.msra.mxu0 0.0
  %323 = vmatprep.subr.mxu0 0.0
  %324 = vmatpush1.msra.mxu0 0.0
  %325 = vmatprep.subr.mxu0 0.0
  %326 = vmatpush1.msra.mxu0 0.0
  %327 = vmatprep.subr.mxu0 0.0
  %328 = vmatpush1.msra.mxu0 0.0
  %329 = vmatprep.subr.mxu0 0.0
  %330 = vmatpush1.msra.mxu0 0.0
  %331 = vmatprep.subr.mxu0 0.0
  %332 = vmatpush1.msra.mxu0 0.0
  %333 = vmatprep.subr.mxu0 0.0
  %334 = vmatpush1.msra.mxu0 0.0
  %335 = vmatprep.subr.mxu0 0.0
  %336 = vmatpush1.msra.mxu0 0.0
  %337 = vmatprep.subr.mxu0 0.0
  %338 = vmatpush1.msra.mxu0 0.0
  %339 = vmatprep.subr.mxu0 0.0
  %340 = vmatpush1.msra.mxu0 0.0
  %341 = vmatprep.subr.mxu0 0.0
  %342 = vmatpush1.msra.mxu0 0.0
  %343 = vmatprep.subr.mxu0 0.0
  %344 = vmatpush1.msra.mxu0 0.0
  %345 = vmatprep.subr.mxu0 0.0
  %346 = vmatpush1.msra.mxu0 0.0
  %347 = vmatprep.subr.mxu0 0.0
  %348 = vmatpush1.msra.mxu0 0.0
  %349 = vmatprep.subr.mxu0 0.0
  %350 = vmatpush1.msra.mxu0 0.0
  %351 = vmatprep.subr.mxu0 0.0
  %352 = vmatpush1.msra.mxu0 0.0
  %353 = vmatprep.mubr.f32.mxu0 0.0
  %354 = vmatmul.mubr.f32.gmra.mrb[0].mxu0 %v283
  %v355 = vpop.f32.mrb[0].mxu0
  %v356 = vadd.f32 %v279, %v355
  %v357 = vpop.f32.mrb[0].mxu0
  %358 = vdwg.mxu0
  %359 = vxpose.xlu0.b32.start [1/16] %v356, 128
  %360 = vxpose.xlu0.b32.cont [2/16] 0.0, 128
  %361 = vxpose.xlu0.b32.cont [3/16] 0.0, 128
  %362 = vxpose.xlu0.b32.cont [4/16] 0.0, 128
  %363 = vxpose.xlu0.b32.cont [5/16] 0.0, 128
  %364 = vxpose.xlu0.b32.cont [6/16] 0.0, 128
  %365 = vxpose.xlu0.b32.cont [7/16] 0.0, 128
  %366 = vxpose.xlu0.b32.cont [8/16] 0.0, 128
  %367 = vxpose.xlu0.b32.cont [9/16] 0.0, 128
  %368 = vxpose.xlu0.b32.cont [10/16] 0.0, 128
  %369 = vxpose.xlu0.b32.cont [11/16] 0.0, 128
  %370 = vxpose.xlu0.b32.cont [12/16] 0.0, 128
  %371 = vxpose.xlu0.b32.cont [13/16] 0.0, 128
  %372 = vxpose.xlu0.b32.cont [14/16] 0.0, 128
  %373 = vxpose.xlu0.b32.cont [15/16] 0.0, 128
  %374 = vxpose.xlu0.b32.end [16/16] 0.0, 128
  %v375 = vpop.trf.xlu0
  %v376 = vpop.trf.xlu0
  %v377 = vpop.trf.xlu0
  %v378 = vpop.trf.xlu0
  %v379 = vpop.trf.xlu0
  %v380 = vpop.trf.xlu0
  %v381 = vpop.trf.xlu0
  %v382 = vpop.trf.xlu0
  %v383 = vpop.trf.xlu0
  %v384 = vpop.trf.xlu0
  %v385 = vpop.trf.xlu0
  %v386 = vpop.trf.xlu0
  %v387 = vpop.trf.xlu0
  %v388 = vpop.trf.xlu0
  %v389 = vpop.trf.xlu0
  %v390 = vpop.trf.xlu0
  %vm391 = vcmask 23552
  %392 = vst.msk [vmem:[%s7] sm:$0xff] %vm391, %v375
  %393 = vst.msk [vmem:[%s7 + $0x8] sm:$0xff] %vm391, %v376
  %394 = vst.msk [vmem:[%s7 + $0x10] sm:$0xff] %vm391, %v377
  %395 = vst.msk [vmem:[%s7 + $0x18] sm:$0xff] %vm391, %v378
  %396 = vst.msk [vmem:[%s7 + $0x20] sm:$0xff] %vm391, %v379
  %397 = vst.msk [vmem:[%s7 + $0x28] sm:$0xff] %vm391, %v380
  %398 = vst.msk [vmem:[%s7 + $0x30] sm:$0xff] %vm391, %v381
  %399 = vst.msk [vmem:[%s7 + $0x38] sm:$0xff] %vm391, %v382
  %400 = vst.msk [vmem:[%s7 + $0x40] sm:$0xff] %vm391, %v383
  %401 = vst.msk [vmem:[%s7 + $0x48] sm:$0xff] %vm391, %v384
  %402 = vst.msk [vmem:[%s7 + $0x50] sm:$0xff] %vm391, %v385
  %403 = vst.msk [vmem:[%s7 + $0x58] sm:$0xff] %vm391, %v386
  %404 = vst.msk [vmem:[%s7 + $0x60] sm:$0xff] %vm391, %v387
  %405 = vst.msk [vmem:[%s7 + $0x68] sm:$0xff] %vm391, %v388
  %406 = vst.msk [vmem:[%s7 + $0x70] sm:$0xff] %vm391, %v389
  %407 = vst.msk [vmem:[%s7 + $0x78] sm:$0xff] %vm391, %v390
  // Predicated region
  $region30: #{classifier_forward.1} parent=0 // pred_check
    _
  $region31: #{classifier_forward.1} parent=0 // pred_check_branch
    %409 = sbr.rel (0) target = $region33
  $region32: #{classifier_forward.1} parent=0 // pred_region
    _
  $region33: #{classifier_forward.1} parent=0 // pred_fallthru
    _
  // Predicated region
  $region34: #{classifier_forward.1} parent=0 // pred_check
    _
  $region35: #{classifier_forward.1} parent=0 // pred_check_branch
    %411 = sbr.rel (0) target = $region37
  $region36: #{classifier_forward.1} parent=0 // pred_region
    _
  $region37: #{classifier_forward.1} parent=0 // pred_fallthru
    _

</llo_original>
